<compile_context>
chip_gen: v5e
topology: v5e:2x2
jax: 0.10.0
libtpu: 0.0.40
codegen_flags: <defaults>
</compile_context>

<pallas_src>
import jax
import jax.numpy as jnp
from jax.experimental import pallas as pl
from jax.experimental.pallas import tpu as pltpu

_LANE = 128                    # vreg lane width
_SUB = 8                       # f32 sublane granularity
_VREG_ELEMS = _LANE * _SUB     # 1024: full-vreg alignment for 1-D blocks
_MAX_BLOCK = 4096 * _LANE      # 512K f32 elems = 2 MiB per buffer
_TILE_ROWS_2D = 2048           # fallback 2-D tile: (2048, 128) f32 = 1 MiB
_SMALL_TOTAL = 65536           # below this, plain fused XLA is strictly faster


def _linear_kernel(params_ref, x_ref, o_ref):
    # params_ref: (2,) float32 in SMEM -> [w, b]
    # x_ref / o_ref: lane-dense tiles in VMEM (1-D or 2-D; body is rank-agnostic).
    w = params_ref[0]
    b = params_ref[1]
    o_ref[...] = (x_ref[...] * w + b).astype(o_ref.dtype)


def _dim_sem_candidates():
    """CORE_PARALLEL first on v7x (2 TensorCores/chip), PARALLEL elsewhere."""
    kind = ""
    try:
        kind = jax.devices()[0].device_kind.lower()
    except Exception:
        pass
    if "7" in kind:  # e.g. "tpu v7x"
        return (pltpu.CORE_PARALLEL, pltpu.PARALLEL)
    return (pltpu.PARALLEL,)


def _cost(total, dtype):
    itemsize = jnp.dtype(dtype).itemsize
    return pl.CostEstimate(
        flops=2 * total,                      # one mul + one add per element
        transcendentals=0,
        bytes_accessed=2 * total * itemsize,  # read x + write y
    )


def _call_flat(params, x1d, total, dtype, dim_sem):
    """Primary path: flat lane-dense 1-D stream, no pad / no trim."""
    block = min(_MAX_BLOCK, (total // _VREG_ELEMS) * _VREG_ELEMS)
    return pl.pallas_call(
        _linear_kernel,
        out_shape=jax.ShapeDtypeStruct((total,), dtype),
        grid=(pl.cdiv(total, block),),        # ragged last block is masked
        in_specs=[
            pl.BlockSpec(memory_space=pltpu.MemorySpace.SMEM),  # [w, b] scalars
            pl.BlockSpec((block,), lambda i: (i,)),             # x block
        ],
        out_specs=pl.BlockSpec((block,), lambda i: (i,)),
        compiler_params=pltpu.CompilerParams(dimension_semantics=(dim_sem,)),
        cost_estimate=_cost(total, dtype),
    )(params, x1d)


def _call_padded2d(params, x1d, total, dtype, dim_sem):
    """Fallback path (previously validated): pad to (rows, 128) tiles, trim."""
    rows = pl.cdiv(total, _LANE)
    rows8 = pl.cdiv(rows, _SUB) * _SUB
    tile = min(_TILE_ROWS_2D, rows8)
    rows_padded = pl.cdiv(rows8, tile) * tile
    padded_total = rows_padded * _LANE

    x_pad = jnp.zeros((padded_total,), dtype).at[:total].set(x1d)
    x2d = x_pad.reshape(rows_padded, _LANE)

    y2d = pl.pallas_call(
        _linear_kernel,
        out_shape=jax.ShapeDtypeStruct((rows_padded, _LANE), dtype),
        grid=(rows_padded // tile,),
        in_specs=[
            pl.BlockSpec(memory_space=pltpu.MemorySpace.SMEM),
            pl.BlockSpec((tile, _LANE), lambda i: (i, 0)),
        ],
        out_specs=pl.BlockSpec((tile, _LANE), lambda i: (i, 0)),
        compiler_params=pltpu.CompilerParams(dimension_semantics=(dim_sem,)),
        cost_estimate=_cost(padded_total, dtype),
    )(params, x2d)
    return y2d.reshape(-1)[:total]


def linear_forward(x, weight, bias):
    """y = x @ weight.T + bias, matching torch.nn.Linear(1, 1, bias=True).

    x:      (N, 1)
    weight: (1, 1)   (out_features, in_features)
    bias:   (1,)
    """
    n, in_f = x.shape
    out_f = weight.shape[0]
    assert in_f == 1 and out_f == 1, "LinearRegressionModel is Linear(1, 1)"
    dtype = x.dtype
    total = n * in_f

    # Small-batch fast path: launch overhead would dominate; a single fused
    # XLA elementwise op is strictly faster here.
    if total < _SMALL_TOTAL:
        return (x * weight.reshape(()) + bias.reshape(())).astype(dtype)

    x1d = x.reshape(-1)  # free: (N, 1) and (N,) are the same HBM bytes
    params = jnp.concatenate(
        [weight.reshape(-1), bias.reshape(-1)]).astype(jnp.float32)

    last_err = None
    for call in (_call_flat, _call_padded2d):
        for dim_sem in _dim_sem_candidates():
            try:
                y1d = call(params, x1d, total, dtype, dim_sem)
                return y1d.reshape(n, out_f)  # free reshape back to (N, 1)
            except Exception as e:  # fall back (e.g. CORE_PARALLEL rejected)
                last_err = e
    raise last_err


if __name__ == "__main__":
    key = jax.random.PRNGKey(0)
    kx, kw, kb, kx2, kx3 = jax.random.split(key, 5)

    # Deterministic parameters (matches nn.Linear(1, 1) shapes).
    weight = jax.random.uniform(kw, (1, 1), jnp.float32, minval=-1.0, maxval=1.0)
    bias = jax.random.uniform(kb, (1,), jnp.float32, minval=-1.0, maxval=1.0)

    # Small example input consistent with the module: batch of 8 scalar samples.
    x = jax.random.normal(kx, (8, 1), jnp.float32)
    y = jax.block_until_ready(linear_forward(x, weight, bias))
    assert y.shape == (8, 1)
    assert jnp.allclose(y, x @ weight.T + bias, atol=1e-5, rtol=1e-5)

    # Exercise the Pallas kernel: two grid steps plus a ragged (masked) tail.
    x_med = jax.random.normal(kx2, (70001, 1), jnp.float32)
    y_med = jax.block_until_ready(linear_forward(x_med, weight, bias))
    assert y_med.shape == (70001, 1)
    assert jnp.allclose(y_med, x_med @ weight.T + bias, atol=1e-5, rtol=1e-5)

    # Exercise full-size 2 MiB blocks: several grid steps plus a ragged tail.
    x_big = jax.random.normal(kx3, (1_200_003, 1), jnp.float32)
    y_big = jax.block_until_ready(linear_forward(x_big, weight, bias))
    assert y_big.shape == (1_200_003, 1)
    assert jnp.allclose(y_big, x_big @ weight.T + bias, atol=1e-5, rtol=1e-5)

    print("KERNEL_OK")
</pallas_src>

<mosaic_0001>
module attributes {stable_mosaic.version = 11 : i64} {
  func.func @_linear_kernel(%arg0: i32, %arg1: memref<2xf32, #tpu.memory_space<smem>>, %arg2: memref<552x128xf32, #tpu.memory_space<vmem>>, %arg3: memref<552x128xf32, #tpu.memory_space<vmem>>) attributes {dimension_semantics = [#tpu.dimension_semantics<parallel>], iteration_bounds = array<i64: 1>, scalar_prefetch = 0 : i64, scratch_operands = 0 : i64, tpu.core_type = #tpu.core_type<tc>, window_params = [{transform_indices = @transform_0, window_bounds = array<i64: 2>}, {transform_indices = @transform_1, window_bounds = array<i64: 552, 128>}, {transform_indices = @transform_2, window_bounds = array<i64: 552, 128>}]} {
    %c0 = arith.constant 0 : index
    %0 = memref.load %arg1[%c0] : memref<2xf32, #tpu.memory_space<smem>>
    %c1 = arith.constant 1 : index
    %1 = memref.load %arg1[%c1] : memref<2xf32, #tpu.memory_space<smem>>
    %c0_0 = arith.constant 0 : index
    %c0_1 = arith.constant 0 : index
    %2 = vector.load %arg2[%c0_0, %c0_1] : memref<552x128xf32, #tpu.memory_space<vmem>>, vector<552x128xf32>
    %3 = vector.broadcast %0 : f32 to vector<552x128xf32>
    %4 = arith.mulf %2, %3 : vector<552x128xf32>
    %5 = vector.broadcast %1 : f32 to vector<552x128xf32>
    %6 = arith.addf %4, %5 : vector<552x128xf32>
    %c0_2 = arith.constant 0 : index
    %c0_3 = arith.constant 0 : index
    %7 = vector.load %arg3[%c0_2, %c0_3] : memref<552x128xf32, #tpu.memory_space<vmem>>, vector<552x128xf32>
    tpu.vector_store %arg3[%c0_2, %c0_3], %6 {strides = array<i32>} : memref<552x128xf32, #tpu.memory_space<vmem>>, vector<552x128xf32>,
    return
  }
  func.func @transform_0(%arg0: i32) -> i32 {
    %c0_i32 = arith.constant 0 : i32
    %c0_i32_0 = arith.constant 0 : i32
    return %c0_i32 : i32
  }
  func.func @transform_1(%arg0: i32) -> (i32, i32) {
    %c0_i32 = arith.constant 0 : i32
    %c0_i32_0 = arith.constant 0 : i32
    return %arg0, %c0_i32 : i32, i32
  }
  func.func @transform_2(%arg0: i32) -> (i32, i32) {
    %c0_i32 = arith.constant 0 : i32
    %c0_i32_0 = arith.constant 0 : i32
    return %arg0, %c0_i32 : i32, i32
  }
}

</mosaic_0001>

<llo_original>
// kernel: tpu_custom_call.1
$region0: #{tpu_custom_call.1}
  #allocation0 [shape = 'u32[]', space=smem, size = 0x4, offset = 0x4, fixed_abs, tag = 'smem constant byte address 0x4 - core index']
  #allocation1 [shape = 'u32[72,128]{1,0:T(1,128)}', space=vmem, size = 0x9000, scoped, tag = 'internal scratch']
  %s0 = inlined_call_operand.hbm [shape: f32[2], index: 0, kind: input, shape index: {}]
  %s1 = inlined_call_operand.hbm [shape: f32[552,128], index: 1, kind: input, shape index: {}]
  %s2 = inlined_call_operand.hbm [shape: f32[552,128], index: 2, kind: output, shape index: {}]
  %s3 = sld [smem:[#allocation0]]
  $region26: #{tpu_custom_call.1} parent=0
    _
  %s5 = ssub.s32 1, %s3
  %s6 = scalar_select 0, %s5, %s3
  $region1: #{tpu_custom_call.1} parent=0
    #allocation2 [shape = 'u8[512]{0}', space=smem, size = 0x200, scoped, tag = 'input window, operand 0, single buffered']
    #allocation3 [shape = 's32[1]{0}', space=sflag, size = 0x4, scoped, tag = 'scoped memory for tpu_custom_call.1']
    #allocation4 [shape = 's32[1]{0}', space=sflag, size = 0x4, scoped, tag = 'scoped memory for tpu_custom_call.1']
    #allocation5 [shape = 's32[1]{0}', space=sflag, size = 0x4, scoped, tag = 'scoped memory for tpu_custom_call.1']
    #allocation6 [shape = 'u8[282624]{0}', space=vmem, size = 0x45000, scoped, tag = 'input window, operand 1, single buffered']
    #allocation7 [shape = 'u8[282624]{0}', space=vmem, size = 0x45000, scoped, tag = 'output window, operand 0, single buffered']
    %7 = vsyncpa [#allocation5], 0
    %8 = vsyncpa [#allocation3], 0
    %9 = vsyncpa [#allocation4], 0
    // Predicated region
    $region2: #{tpu_custom_call.1} parent=1 // pred_check
      _
    $region3: #{tpu_custom_call.1} parent=1 // pred_check_branch
      %11 = sbr.rel (0) target = $region5
    $region4: #{tpu_custom_call.1} parent=1 // pred_region
      %13 = vsyncadd [#allocation5], 0
      %s15 = sshll.u32 %s0, 4
      %s16 = int_to_ptr.hbm [resolvable:$true] %s15
      %18 = dma.hbm_to_smem %s16, 16, [#allocation2], [#allocation5]
    $region5: #{tpu_custom_call.1} parent=1 // pred_fallthru
      _
    // Predicated region
    $region6: #{tpu_custom_call.1} parent=1 // pred_check
      _
    $region7: #{tpu_custom_call.1} parent=1 // pred_check_branch
      %20 = sbr.rel (0) target = $region9
    $region8: #{tpu_custom_call.1} parent=1 // pred_region
      %22 = vsyncadd [#allocation3], 0
      %s23 = sshll.u32 %s1, 4
      %s24 = int_to_ptr.hbm [resolvable:$true] %s23
      %s25 = sshll.u32 [#allocation6], 4
      %s26 = int_to_ptr.vmem [resolvable:$true] %s25
      %31 = dma.hbm_to_vmem [thread:$0]  %s24, 8832, %s26, [#allocation3], 128, 128, 8
    $region9: #{tpu_custom_call.1} parent=1 // pred_fallthru
      _
    // Predicated region
    $region10: #{tpu_custom_call.1} parent=1 // pred_check
      _
    $region11: #{tpu_custom_call.1} parent=1 // pred_check_branch
      %33 = sbr.rel (0) target = $region13
    $region12: #{tpu_custom_call.1} parent=1 // pred_region
      %35 = dma.done [#allocation5], 16
    $region13: #{tpu_custom_call.1} parent=1 // pred_fallthru
      _
    // Predicated region
    $region14: #{tpu_custom_call.1} parent=1 // pred_check
      _
    $region15: #{tpu_custom_call.1} parent=1 // pred_check_branch
      %37 = sbr.rel (0) target = $region17
    $region16: #{tpu_custom_call.1} parent=1 // pred_region
      %39 = dma.done [#allocation3], 8832
    $region17: #{tpu_custom_call.1} parent=1 // pred_fallthru
      _
    %40 = sfence
    %s41 = sld [smem:[#allocation2]]
    %s42 = sld [smem:[#allocation2 + $0x1]]
    %v43 = vld [vmem:[#allocation6] sm:$0xff]
    %v44 = vld [vmem:[#allocation6 + $0x8] sm:$0xff]
    %v45 = vld [vmem:[#allocation6 + $0x10] sm:$0xff]
    %v46 = vld [vmem:[#allocation6 + $0x18] sm:$0xff]
    %v47 = vld [vmem:[#allocation6 + $0x20] sm:$0xff]
    %v48 = vld [vmem:[#allocation6 + $0x28] sm:$0xff]
    %v49 = vld [vmem:[#allocation6 + $0x30] sm:$0xff]
    %v50 = vld [vmem:[#allocation6 + $0x38] sm:$0xff]
    %v51 = vld [vmem:[#allocation6 + $0x40] sm:$0xff]
    %v52 = vld [vmem:[#allocation6 + $0x48] sm:$0xff]
    %v53 = vld [vmem:[#allocation6 + $0x50] sm:$0xff]
    %v54 = vld [vmem:[#allocation6 + $0x58] sm:$0xff]
    %v55 = vld [vmem:[#allocation6 + $0x60] sm:$0xff]
    %v56 = vld [vmem:[#allocation6 + $0x68] sm:$0xff]
    %v57 = vld [vmem:[#allocation6 + $0x70] sm:$0xff]
    %v58 = vld [vmem:[#allocation6 + $0x78] sm:$0xff]
    %v59 = vld [vmem:[#allocation6 + $0x80] sm:$0xff]
    %v60 = vld [vmem:[#allocation6 + $0x88] sm:$0xff]
    %v61 = vld [vmem:[#allocation6 + $0x90] sm:$0xff]
    %v62 = vld [vmem:[#allocation6 + $0x98] sm:$0xff]
    %v63 = vld [vmem:[#allocation6 + $0xa0] sm:$0xff]
    %v64 = vld [vmem:[#allocation6 + $0xa8] sm:$0xff]
    %v65 = vld [vmem:[#allocation6 + $0xb0] sm:$0xff]
    %v66 = vld [vmem:[#allocation6 + $0xb8] sm:$0xff]
    %v67 = vld [vmem:[#allocation6 + $0xc0] sm:$0xff]
    %v68 = vld [vmem:[#allocation6 + $0xc8] sm:$0xff]
    %v69 = vld [vmem:[#allocation6 + $0xd0] sm:$0xff]
    %v70 = vld [vmem:[#allocation6 + $0xd8] sm:$0xff]
    %v71 = vld [vmem:[#allocation6 + $0xe0] sm:$0xff]
    %v72 = vld [vmem:[#allocation6 + $0xe8] sm:$0xff]
    %v73 = vld [vmem:[#allocation6 + $0xf0] sm:$0xff]
    %v74 = vld [vmem:[#allocation6 + $0xf8] sm:$0xff]
    %v75 = vld [vmem:[#allocation6 + $0x100] sm:$0xff]
    %v76 = vld [vmem:[#allocation6 + $0x108] sm:$0xff]
    %v77 = vld [vmem:[#allocation6 + $0x110] sm:$0xff]
    %v78 = vld [vmem:[#allocation6 + $0x118] sm:$0xff]
    %v79 = vld [vmem:[#allocation6 + $0x120] sm:$0xff]
    %v80 = vld [vmem:[#allocation6 + $0x128] sm:$0xff]
    %v81 = vld [vmem:[#allocation6 + $0x130] sm:$0xff]
    %v82 = vld [vmem:[#allocation6 + $0x138] sm:$0xff]
    %v83 = vld [vmem:[#allocation6 + $0x140] sm:$0xff]
    %v84 = vld [vmem:[#allocation6 + $0x148] sm:$0xff]
    %v85 = vld [vmem:[#allocation6 + $0x150] sm:$0xff]
    %v86 = vld [vmem:[#allocation6 + $0x158] sm:$0xff]
    %v87 = vld [vmem:[#allocation6 + $0x160] sm:$0xff]
    %v88 = vld [vmem:[#allocation6 + $0x168] sm:$0xff]
    %v89 = vld [vmem:[#allocation6 + $0x170] sm:$0xff]
    %v90 = vld [vmem:[#allocation6 + $0x178] sm:$0xff]
    %v91 = vld [vmem:[#allocation6 + $0x180] sm:$0xff]
    %v92 = vld [vmem:[#allocation6 + $0x188] sm:$0xff]
    %v93 = vld [vmem:[#allocation6 + $0x190] sm:$0xff]
    %v94 = vld [vmem:[#allocation6 + $0x198] sm:$0xff]
    %v95 = vld [vmem:[#allocation6 + $0x1a0] sm:$0xff]
    %v96 = vld [vmem:[#allocation6 + $0x1a8] sm:$0xff]
    %v97 = vld [vmem:[#allocation6 + $0x1b0] sm:$0xff]
    %v98 = vld [vmem:[#allocation6 + $0x1b8] sm:$0xff]
    %v99 = vld [vmem:[#allocation6 + $0x1c0] sm:$0xff]
    %v100 = vld [vmem:[#allocation6 + $0x1c8] sm:$0xff]
    %v101 = vld [vmem:[#allocation6 + $0x1d0] sm:$0xff]
    %v102 = vld [vmem:[#allocation6 + $0x1d8] sm:$0xff]
    %v103 = vld [vmem:[#allocation6 + $0x1e0] sm:$0xff]
    %v104 = vld [vmem:[#allocation6 + $0x1e8] sm:$0xff]
    %v105 = vld [vmem:[#allocation6 + $0x1f0] sm:$0xff]
    %v106 = vld [vmem:[#allocation6 + $0x1f8] sm:$0xff]
    %v107 = vld [vmem:[#allocation6 + $0x200] sm:$0xff]
    %v108 = vld [vmem:[#allocation6 + $0x208] sm:$0xff]
    %v109 = vld [vmem:[#allocation6 + $0x210] sm:$0xff]
    %v110 = vld [vmem:[#allocation6 + $0x218] sm:$0xff]
    %v111 = vld [vmem:[#allocation6 + $0x220] sm:$0xff]
    %v112 = vstv %s41
    %v113 = vmul.f32 %v43, %v112
    %v114 = vmul.f32 %v44, %v112
    %v115 = vmul.f32 %v45, %v112
    %v116 = vmul.f32 %v46, %v112
    %v117 = vmul.f32 %v47, %v112
    %v118 = vmul.f32 %v48, %v112
    %v119 = vmul.f32 %v49, %v112
    %v120 = vmul.f32 %v50, %v112
    %v121 = vmul.f32 %v51, %v112
    %v122 = vmul.f32 %v52, %v112
    %v123 = vmul.f32 %v53, %v112
    %v124 = vmul.f32 %v54, %v112
    %v125 = vmul.f32 %v55, %v112
    %v126 = vmul.f32 %v56, %v112
    %v127 = vmul.f32 %v57, %v112
    %v128 = vmul.f32 %v58, %v112
    %v129 = vmul.f32 %v59, %v112
    %v130 = vmul.f32 %v60, %v112
    %v131 = vmul.f32 %v61, %v112
    %v132 = vmul.f32 %v62, %v112
    %v133 = vmul.f32 %v63, %v112
    %v134 = vmul.f32 %v64, %v112
    %v135 = vmul.f32 %v65, %v112
    %v136 = vmul.f32 %v66, %v112
    %v137 = vmul.f32 %v67, %v112
    %v138 = vmul.f32 %v68, %v112
    %v139 = vmul.f32 %v69, %v112
    %v140 = vmul.f32 %v70, %v112
    %v141 = vmul.f32 %v71, %v112
    %v142 = vmul.f32 %v72, %v112
    %v143 = vmul.f32 %v73, %v112
    %v144 = vmul.f32 %v74, %v112
    %v145 = vmul.f32 %v75, %v112
    %v146 = vmul.f32 %v76, %v112
    %v147 = vmul.f32 %v77, %v112
    %v148 = vmul.f32 %v78, %v112
    %v149 = vmul.f32 %v79, %v112
    %v150 = vmul.f32 %v80, %v112
    %v151 = vmul.f32 %v81, %v112
    %v152 = vmul.f32 %v82, %v112
    %v153 = vmul.f32 %v83, %v112
    %v154 = vmul.f32 %v84, %v112
    %v155 = vmul.f32 %v85, %v112
    %v156 = vmul.f32 %v86, %v112
    %v157 = vmul.f32 %v87, %v112
    %v158 = vmul.f32 %v88, %v112
    %v159 = vmul.f32 %v89, %v112
    %v160 = vmul.f32 %v90, %v112
    %v161 = vmul.f32 %v91, %v112
    %v162 = vmul.f32 %v92, %v112
    %v163 = vmul.f32 %v93, %v112
    %v164 = vmul.f32 %v94, %v112
    %v165 = vmul.f32 %v95, %v112
    %v166 = vmul.f32 %v96, %v112
    %v167 = vmul.f32 %v97, %v112
    %v168 = vmul.f32 %v98, %v112
    %v169 = vmul.f32 %v99, %v112
    %v170 = vmul.f32 %v100, %v112
    %v171 = vmul.f32 %v101, %v112
    %v172 = vmul.f32 %v102, %v112
    %v173 = vmul.f32 %v103, %v112
    %v174 = vmul.f32 %v104, %v112
    %v175 = vmul.f32 %v105, %v112
    %v176 = vmul.f32 %v106, %v112
    %v177 = vmul.f32 %v107, %v112
    %v178 = vmul.f32 %v108, %v112
    %v179 = vmul.f32 %v109, %v112
    %v180 = vmul.f32 %v110, %v112
    %v181 = vmul.f32 %v111, %v112
    %v182 = vstv %s42
    %v183 = vadd.f32 %v113, %v182
    %v184 = vadd.f32 %v114, %v182
    %v185 = vadd.f32 %v115, %v182
    %v186 = vadd.f32 %v116, %v182
    %v187 = vadd.f32 %v117, %v182
    %v188 = vadd.f32 %v118, %v182
    %v189 = vadd.f32 %v119, %v182
    %v190 = vadd.f32 %v120, %v182
    %v191 = vadd.f32 %v121, %v182
    %v192 = vadd.f32 %v122, %v182
    %v193 = vadd.f32 %v123, %v182
    %v194 = vadd.f32 %v124, %v182
    %v195 = vadd.f32 %v125, %v182
    %v196 = vadd.f32 %v126, %v182
    %v197 = vadd.f32 %v127, %v182
    %v198 = vadd.f32 %v128, %v182
    %v199 = vadd.f32 %v129, %v182
    %v200 = vadd.f32 %v130, %v182
    %v201 = vadd.f32 %v131, %v182
    %v202 = vadd.f32 %v132, %v182
    %v203 = vadd.f32 %v133, %v182
    %v204 = vadd.f32 %v134, %v182
    %v205 = vadd.f32 %v135, %v182
    %v206 = vadd.f32 %v136, %v182
    %v207 = vadd.f32 %v137, %v182
    %v208 = vadd.f32 %v138, %v182
    %v209 = vadd.f32 %v139, %v182
    %v210 = vadd.f32 %v140, %v182
    %v211 = vadd.f32 %v141, %v182
    %v212 = vadd.f32 %v142, %v182
    %v213 = vadd.f32 %v143, %v182
    %v214 = vadd.f32 %v144, %v182
    %v215 = vadd.f32 %v145, %v182
    %v216 = vadd.f32 %v146, %v182
    %v217 = vadd.f32 %v147, %v182
    %v218 = vadd.f32 %v148, %v182
    %v219 = vadd.f32 %v149, %v182
    %v220 = vadd.f32 %v150, %v182
    %v221 = vadd.f32 %v151, %v182
    %v222 = vadd.f32 %v152, %v182
    %v223 = vadd.f32 %v153, %v182
    %v224 = vadd.f32 %v154, %v182
    %v225 = vadd.f32 %v155, %v182
    %v226 = vadd.f32 %v156, %v182
    %v227 = vadd.f32 %v157, %v182
    %v228 = vadd.f32 %v158, %v182
    %v229 = vadd.f32 %v159, %v182
    %v230 = vadd.f32 %v160, %v182
    %v231 = vadd.f32 %v161, %v182
    %v232 = vadd.f32 %v162, %v182
    %v233 = vadd.f32 %v163, %v182
    %v234 = vadd.f32 %v164, %v182
    %v235 = vadd.f32 %v165, %v182
    %v236 = vadd.f32 %v166, %v182
    %v237 = vadd.f32 %v167, %v182
    %v238 = vadd.f32 %v168, %v182
    %v239 = vadd.f32 %v169, %v182
    %v240 = vadd.f32 %v170, %v182
    %v241 = vadd.f32 %v171, %v182
    %v242 = vadd.f32 %v172, %v182
    %v243 = vadd.f32 %v173, %v182
    %v244 = vadd.f32 %v174, %v182
    %v245 = vadd.f32 %v175, %v182
    %v246 = vadd.f32 %v176, %v182
    %v247 = vadd.f32 %v177, %v182
    %v248 = vadd.f32 %v178, %v182
    %v249 = vadd.f32 %v179, %v182
    %v250 = vadd.f32 %v180, %v182
    %v251 = vadd.f32 %v181, %v182
    %252 = vst [vmem:[#allocation7] sm:$0xff] %v183
    %253 = vst [vmem:[#allocation7 + $0x8] sm:$0xff] %v184
    %254 = vst [vmem:[#allocation7 + $0x10] sm:$0xff] %v185
    %255 = vst [vmem:[#allocation7 + $0x18] sm:$0xff] %v186
    %256 = vst [vmem:[#allocation7 + $0x20] sm:$0xff] %v187
    %257 = vst [vmem:[#allocation7 + $0x28] sm:$0xff] %v188
    %258 = vst [vmem:[#allocation7 + $0x30] sm:$0xff] %v189
    %259 = vst [vmem:[#allocation7 + $0x38] sm:$0xff] %v190
    %260 = vst [vmem:[#allocation7 + $0x40] sm:$0xff] %v191
    %261 = vst [vmem:[#allocation7 + $0x48] sm:$0xff] %v192
    %262 = vst [vmem:[#allocation7 + $0x50] sm:$0xff] %v193
    %263 = vst [vmem:[#allocation7 + $0x58] sm:$0xff] %v194
    %264 = vst [vmem:[#allocation7 + $0x60] sm:$0xff] %v195
    %265 = vst [vmem:[#allocation7 + $0x68] sm:$0xff] %v196
    %266 = vst [vmem:[#allocation7 + $0x70] sm:$0xff] %v197
    %267 = vst [vmem:[#allocation7 + $0x78] sm:$0xff] %v198
    %268 = vst [vmem:[#allocation7 + $0x80] sm:$0xff] %v199
    %269 = vst [vmem:[#allocation7 + $0x88] sm:$0xff] %v200
    %270 = vst [vmem:[#allocation7 + $0x90] sm:$0xff] %v201
    %271 = vst [vmem:[#allocation7 + $0x98] sm:$0xff] %v202
    %272 = vst [vmem:[#allocation7 + $0xa0] sm:$0xff] %v203
    %273 = vst [vmem:[#allocation7 + $0xa8] sm:$0xff] %v204
    %274 = vst [vmem:[#allocation7 + $0xb0] sm:$0xff] %v205
    %275 = vst [vmem:[#allocation7 + $0xb8] sm:$0xff] %v206
    %276 = vst [vmem:[#allocation7 + $0xc0] sm:$0xff] %v207
    %277 = vst [vmem:[#allocation7 + $0xc8] sm:$0xff] %v208
    %278 = vst [vmem:[#allocation7 + $0xd0] sm:$0xff] %v209
    %279 = vst [vmem:[#allocation7 + $0xd8] sm:$0xff] %v210
    %280 = vst [vmem:[#allocation7 + $0xe0] sm:$0xff] %v211
    %281 = vst [vmem:[#allocation7 + $0xe8] sm:$0xff] %v212
    %282 = vst [vmem:[#allocation7 + $0xf0] sm:$0xff] %v213
    %283 = vst [vmem:[#allocation7 + $0xf8] sm:$0xff] %v214
    %284 = vst [vmem:[#allocation7 + $0x100] sm:$0xff] %v215
    %285 = vst [vmem:[#allocation7 + $0x108] sm:$0xff] %v216
    %286 = vst [vmem:[#allocation7 + $0x110] sm:$0xff] %v217
    %287 = vst [vmem:[#allocation7 + $0x118] sm:$0xff] %v218
    %288 = vst [vmem:[#allocation7 + $0x120] sm:$0xff] %v219
    %289 = vst [vmem:[#allocation7 + $0x128] sm:$0xff] %v220
    %290 = vst [vmem:[#allocation7 + $0x130] sm:$0xff] %v221
    %291 = vst [vmem:[#allocation7 + $0x138] sm:$0xff] %v222
    %292 = vst [vmem:[#allocation7 + $0x140] sm:$0xff] %v223
    %293 = vst [vmem:[#allocation7 + $0x148] sm:$0xff] %v224
    %294 = vst [vmem:[#allocation7 + $0x150] sm:$0xff] %v225
    %295 = vst [vmem:[#allocation7 + $0x158] sm:$0xff] %v226
    %296 = vst [vmem:[#allocation7 + $0x160] sm:$0xff] %v227
    %297 = vst [vmem:[#allocation7 + $0x168] sm:$0xff] %v228
    %298 = vst [vmem:[#allocation7 + $0x170] sm:$0xff] %v229
    %299 = vst [vmem:[#allocation7 + $0x178] sm:$0xff] %v230
    %300 = vst [vmem:[#allocation7 + $0x180] sm:$0xff] %v231
    %301 = vst [vmem:[#allocation7 + $0x188] sm:$0xff] %v232
    %302 = vst [vmem:[#allocation7 + $0x190] sm:$0xff] %v233
    %303 = vst [vmem:[#allocation7 + $0x198] sm:$0xff] %v234
    %304 = vst [vmem:[#allocation7 + $0x1a0] sm:$0xff] %v235
    %305 = vst [vmem:[#allocation7 + $0x1a8] sm:$0xff] %v236
    %306 = vst [vmem:[#allocation7 + $0x1b0] sm:$0xff] %v237
    %307 = vst [vmem:[#allocation7 + $0x1b8] sm:$0xff] %v238
    %308 = vst [vmem:[#allocation7 + $0x1c0] sm:$0xff] %v239
    %309 = vst [vmem:[#allocation7 + $0x1c8] sm:$0xff] %v240
    %310 = vst [vmem:[#allocation7 + $0x1d0] sm:$0xff] %v241
    %311 = vst [vmem:[#allocation7 + $0x1d8] sm:$0xff] %v242
    %312 = vst [vmem:[#allocation7 + $0x1e0] sm:$0xff] %v243
    %313 = vst [vmem:[#allocation7 + $0x1e8] sm:$0xff] %v244
    %314 = vst [vmem:[#allocation7 + $0x1f0] sm:$0xff] %v245
    %315 = vst [vmem:[#allocation7 + $0x1f8] sm:$0xff] %v246
    %316 = vst [vmem:[#allocation7 + $0x200] sm:$0xff] %v247
    %317 = vst [vmem:[#allocation7 + $0x208] sm:$0xff] %v248
    %318 = vst [vmem:[#allocation7 + $0x210] sm:$0xff] %v249
    %319 = vst [vmem:[#allocation7 + $0x218] sm:$0xff] %v250
    %320 = vst [vmem:[#allocation7 + $0x220] sm:$0xff] %v251
    // Predicated region
    $region18: #{tpu_custom_call.1} parent=1 // pred_check
      _
    $region19: #{tpu_custom_call.1} parent=1 // pred_check_branch
      %322 = sbr.rel (0) target = $region21
    $region20: #{tpu_custom_call.1} parent=1 // pred_region
      %324 = vsyncadd [#allocation4], 0
      %s325 = sshll.u32 [#allocation7], 4
      %s326 = int_to_ptr.vmem [resolvable:$true] %s325
      %s327 = sshll.u32 %s2, 4
      %s328 = int_to_ptr.hbm [resolvable:$true] %s327
      %333 = dma.vmem_to_hbm [thread:$0]  %s326, 8832, %s328, [#allocation4], 128, 128, 8
    $region21: #{tpu_custom_call.1} parent=1 // pred_fallthru
      _
    // Predicated region
    $region22: #{tpu_custom_call.1} parent=1 // pred_check
      _
    $region23: #{tpu_custom_call.1} parent=1 // pred_check_branch
      %335 = sbr.rel (0) target = $region25
    $region24: #{tpu_custom_call.1} parent=1 // pred_region
      %337 = dma.done [#allocation4], 8832
    $region25: #{tpu_custom_call.1} parent=1 // pred_fallthru
      _
    %338 = vsyncpa [#allocation3], 1
    %339 = vsyncpa [#allocation4], 1
    %340 = vsyncpa [#allocation5], 1

</llo_original>
